<compile_context>
chip_gen: v7x
topology: tpu7x:2x2x1
jax: 0.10.0
libtpu: 0.0.40
codegen_flags: <defaults>
</compile_context>

<pallas_src>
import functools

import jax
import jax.numpy as jnp
from jax.experimental import pallas as pl
from jax.experimental.pallas import tpu as pltpu


def _round_up(x, m):
    return ((x + m - 1) // m) * m


# VMEM sizing: explicit scoped limit safe on every generation (v7x has 64 MiB
# physical); tiles are chosen to keep the double-buffered working set under a
# smaller budget so there is headroom for compiler scratch.
_VMEM_LIMIT_BYTES = 48 * 1024 * 1024
_VMEM_TILE_BUDGET = 36 * 1024 * 1024


def _tile_footprint_bytes(TB, F, Np, const_bytes):
    # double-buffered f32 x tile + double-buffered bf16 out tile + resident consts
    return 2 * TB * F * 4 + 2 * TB * Np * 2 + const_bytes


def _choose_batch_tile(B, tb, F, Np, const_bytes):
    """Balanced batch tile: fits the VMEM budget, >=2 grid steps when B allows."""
    if B <= 8:
        return B  # single full-extent block (satisfies the (8,128) rule)
    # Shrink the target tile until the double-buffered working set fits VMEM.
    while tb > 8 and _tile_footprint_bytes(
            _round_up(min(tb, B), 8), F, Np, const_bytes) > _VMEM_TILE_BUDGET:
        tb //= 2
    # >=2 steps so the "parallel" batch axis can shard across v7x's 2 TCs.
    min_steps = 2 if B >= 16 else 1
    n_steps = max(pl.cdiv(B, tb), min_steps)
    return _round_up(pl.cdiv(B, n_steps), 8)


def _const_spec(shape):
    """BlockSpec for a grid-invariant operand (stays resident in VMEM).

    Requests single-buffering when the installed JAX supports pipeline_mode;
    falls back to the default (double-buffered) otherwise."""
    index_map = lambda i: (0, 0)
    try:
        return pl.BlockSpec(shape, index_map, pipeline_mode=pl.Buffered(1))
    except (AttributeError, TypeError):
        return pl.BlockSpec(shape, index_map)


def mlp_kernel(x_ref, w1_ref, b1_ref, w2_ref, b2_ref, o_ref):
    # Cast the f32 activation tile to bf16 in-kernel (hides under the DMA).
    a0 = x_ref[...].astype(jnp.bfloat16)
    # z1 = x @ W1 + b1 : bf16 operands, f32 MXU accumulation, f32 bias add.
    z1 = jnp.dot(a0, w1_ref[...], preferred_element_type=jnp.float32) + b1_ref[...]
    # ReLU, back to bf16 so the second matmul also runs at native MXU rate.
    a1 = jnp.maximum(z1, 0.0).astype(jnp.bfloat16)
    y = jnp.dot(a1, w2_ref[...], preferred_element_type=jnp.float32) + b2_ref[...]
    o_ref[...] = y.astype(o_ref.dtype)   # bf16 store (lane-dense, halved writeback)


def prepare_params(w1_t, b1, w2_t, b2, num_outputs):
    """One-time weight/bias prep hoisted out of the forward path.

    Casts weights to bf16 and zero-pads hidden/output feature dims to
    multiples of 128 (lane-dense).  Zero padding is mathematically inert:
    zero W1 columns -> ReLU(0)=0 -> zero W2 rows contribute nothing.
    w1_t: (num_inputs, num_hiddens), w2_t: (num_hiddens, num_outputs)."""
    F, Hd = w1_t.shape
    Hp = _round_up(Hd, 128)
    Np = _round_up(num_outputs, 128)
    w1p = jnp.zeros((F, Hp), jnp.bfloat16).at[:, :Hd].set(w1_t.astype(jnp.bfloat16))
    b1p = jnp.zeros((1, Hp), jnp.float32).at[0, :Hd].set(b1)
    w2p = jnp.zeros((Hp, Np), jnp.bfloat16).at[:Hd, :num_outputs].set(
        w2_t.astype(jnp.bfloat16))
    b2p = jnp.zeros((1, Np), jnp.float32).at[0, :num_outputs].set(b2)
    return w1p, b1p, w2p, b2p


@functools.partial(jax.jit, static_argnames=("num_outputs", "tb"))
def mlp_forward(x, w1p, b1p, w2p, b2p, *, num_outputs, tb=1024):
    """x: (B, C, H, W) float32; padded params from prepare_params.
    Returns (B, num_outputs // 6, 6) float32."""
    B = x.shape[0]
    a0 = x.reshape(B, -1)                # f32, same flatten order as torch .view(B, -1)
    F = a0.shape[1]
    Hp = w1p.shape[1]
    Np = w2p.shape[1]
    assert w1p.shape[0] == F, "flattened input size must match prepared W1"

    const_bytes = 2 * ((F * Hp + Hp * Np) * 2 + (Hp + Np) * 4)
    TB = _choose_batch_tile(B, tb, F, Np, const_bytes)
    grid = (pl.cdiv(B, TB),)

    yp = pl.pallas_call(
        mlp_kernel,
        out_shape=jax.ShapeDtypeStruct((B, Np), jnp.bfloat16),
        grid_spec=pltpu.PrefetchScalarGridSpec(
            num_scalar_prefetch=0,
            grid=grid,
            in_specs=[
                pl.BlockSpec((TB, F), lambda i: (i, 0)),   # x: f32, tiled over batch
                _const_spec((F, Hp)),                      # W1: VMEM-resident
                _const_spec((1, Hp)),                      # b1
                _const_spec((Hp, Np)),                     # W2
                _const_spec((1, Np)),                      # b2
            ],
            out_specs=pl.BlockSpec((TB, Np), lambda i: (i, 0)),
        ),
        compiler_params=pltpu.CompilerParams(
            dimension_semantics=("parallel",),             # megacore split on v7x
            vmem_limit_bytes=_VMEM_LIMIT_BYTES,
        ),
    )(a0, w1p, b1p, w2p, b2p)

    y = yp[:, :num_outputs].astype(jnp.float32)
    return y.reshape(B, num_outputs // 6, 6)


def init_params(key, num_inputs, num_hiddens, num_outputs):
    """Deterministic init mimicking nn.Linear's uniform(-1/sqrt(fan_in), +)."""
    k1, k2, k3, k4 = jax.random.split(key, 4)
    bound1 = 1.0 / jnp.sqrt(num_inputs)
    bound2 = 1.0 / jnp.sqrt(num_hiddens)
    # stored transposed: (in_features, out_features)
    w1_t = jax.random.uniform(k1, (num_inputs, num_hiddens),
                              jnp.float32, -bound1, bound1)
    b1 = jax.random.uniform(k2, (num_hiddens,), jnp.float32, -bound1, bound1)
    w2_t = jax.random.uniform(k3, (num_hiddens, num_outputs),
                              jnp.float32, -bound2, bound2)
    b2 = jax.random.uniform(k4, (num_outputs,), jnp.float32, -bound2, bound2)
    return w1_t, b1, w2_t, b2


if __name__ == "__main__":
    # Small shapes consistent with the module: x (B, C, H, W) flattens to
    # num_inputs features; num_outputs must be divisible by 6.
    B, C, H, W = 2, 4, 16, 16
    num_inputs = C * H * W       # 1024
    num_hiddens = 32
    num_outputs = 12             # -> output (B, 2, 6)

    key = jax.random.PRNGKey(0)
    kx, kp = jax.random.split(key)
    x = jax.random.normal(kx, (B, C, H, W), jnp.float32)
    w1_t, b1, w2_t, b2 = init_params(kp, num_inputs, num_hiddens, num_outputs)

    # One-time parameter prep (cast + pad) hoisted out of the forward path.
    w1p, b1p, w2p, b2p = prepare_params(w1_t, b1, w2_t, b2, num_outputs)

    out = mlp_forward(x, w1p, b1p, w2p, b2p, num_outputs=num_outputs)
    jax.block_until_ready(out)
    assert out.shape == (B, num_outputs // 6, 6)

    # Reference 1: matched precision flow (bf16 operands, f32 acc, bf16 store).
    # Tolerance covers one bf16 ulp on O(1) values.
    a0_bf = x.reshape(B, -1).astype(jnp.bfloat16)
    z1 = jnp.dot(a0_bf, w1_t.astype(jnp.bfloat16),
                 preferred_element_type=jnp.float32) + b1
    a1 = jnp.maximum(z1, 0.0).astype(jnp.bfloat16)
    y_bf = (jnp.dot(a1, w2_t.astype(jnp.bfloat16),
                    preferred_element_type=jnp.float32) + b2).astype(jnp.bfloat16)
    ref_bf = y_bf.astype(jnp.float32).reshape(B, num_outputs // 6, 6)
    assert jnp.allclose(out, ref_bf, atol=1e-2, rtol=1e-2)

    # Reference 2: full-f32 torch-equivalent math (loose tol for the bf16 path).
    a0 = x.reshape(B, -1)
    ref_f32 = (jnp.maximum(a0 @ w1_t + b1, 0.0) @ w2_t + b2).reshape(
        B, num_outputs // 6, 6)
    assert jnp.allclose(out, ref_f32, atol=5e-2, rtol=5e-2)

    print("KERNEL_OK")
</pallas_src>

<mosaic_0001>
module attributes {stable_mosaic.version = 11 : i64} {
  func.func @mlp_kernel(%arg0: i32, %arg1: memref<2x1024xf32, #tpu.memory_space<vmem>>, %arg2: memref<1024x128xbf16, #tpu.memory_space<vmem>>, %arg3: memref<1x128xf32, #tpu.memory_space<vmem>>, %arg4: memref<128x128xbf16, #tpu.memory_space<vmem>>, %arg5: memref<1x128xf32, #tpu.memory_space<vmem>>, %arg6: memref<2x128xbf16, #tpu.memory_space<vmem>>) attributes {dimension_semantics = [#tpu.dimension_semantics<parallel>], iteration_bounds = array<i64: 1>, scalar_prefetch = 0 : i64, scratch_operands = 0 : i64, tpu.core_type = #tpu.core_type<tc>, window_params = [{transform_indices = @transform_0, window_bounds = array<i64: 2, 1024>}, {pipeline_mode = #tpu.pipeline_mode<synchronous>, transform_indices = @transform_1, window_bounds = array<i64: 1024, 128>}, {pipeline_mode = #tpu.pipeline_mode<synchronous>, transform_indices = @transform_2, window_bounds = array<i64: 1, 128>}, {pipeline_mode = #tpu.pipeline_mode<synchronous>, transform_indices = @transform_3, window_bounds = array<i64: 128, 128>}, {pipeline_mode = #tpu.pipeline_mode<synchronous>, transform_indices = @transform_4, window_bounds = array<i64: 1, 128>}, {transform_indices = @transform_5, window_bounds = array<i64: 2, 128>}]} {
    %c0 = arith.constant 0 : index
    %c0_0 = arith.constant 0 : index
    %0 = vector.load %arg1[%c0, %c0_0] : memref<2x1024xf32, #tpu.memory_space<vmem>>, vector<2x1024xf32>
    %1 = arith.truncf %0 : vector<2x1024xf32> to vector<2x1024xbf16>
    %c0_1 = arith.constant 0 : index
    %c0_2 = arith.constant 0 : index
    %2 = vector.load %arg2[%c0_1, %c0_2] : memref<1024x128xbf16, #tpu.memory_space<vmem>>, vector<1024x128xbf16>
    %cst = arith.constant dense<0.000000e+00> : vector<2x128xf32>
    %3 = tpu.matmul %1, %2, %cst {dimension_numbers = #tpu.dot_dimension_numbers<[1], [0], [0], [1], [0, 0, 1, 1], [], []>} : vector<2x1024xbf16>, vector<1024x128xbf16>, vector<2x128xf32> -> vector<2x128xf32>
    %c0_3 = arith.constant 0 : index
    %c0_4 = arith.constant 0 : index
    %4 = vector.load %arg3[%c0_3, %c0_4] : memref<1x128xf32, #tpu.memory_space<vmem>>, vector<1x128xf32>
    %5 = vector.broadcast %4 : vector<1x128xf32> to vector<2x128xf32>
    %6 = arith.addf %3, %5 : vector<2x128xf32>
    %cst_5 = arith.constant 0.000000e+00 : f32
    %7 = vector.broadcast %cst_5 : f32 to vector<2x128xf32>
    %8 = arith.maximumf %6, %7 : vector<2x128xf32>
    %9 = arith.truncf %8 : vector<2x128xf32> to vector<2x128xbf16>
    %c0_6 = arith.constant 0 : index
    %c0_7 = arith.constant 0 : index
    %10 = vector.load %arg4[%c0_6, %c0_7] : memref<128x128xbf16, #tpu.memory_space<vmem>>, vector<128x128xbf16>
    %cst_8 = arith.constant dense<0.000000e+00> : vector<2x128xf32>
    %11 = tpu.matmul %9, %10, %cst_8 {dimension_numbers = #tpu.dot_dimension_numbers<[1], [0], [0], [1], [0, 0, 1, 1], [], []>} : vector<2x128xbf16>, vector<128x128xbf16>, vector<2x128xf32> -> vector<2x128xf32>
    %c0_9 = arith.constant 0 : index
    %c0_10 = arith.constant 0 : index
    %12 = vector.load %arg5[%c0_9, %c0_10] : memref<1x128xf32, #tpu.memory_space<vmem>>, vector<1x128xf32>
    %13 = vector.broadcast %12 : vector<1x128xf32> to vector<2x128xf32>
    %14 = arith.addf %11, %13 : vector<2x128xf32>
    %15 = arith.truncf %14 : vector<2x128xf32> to vector<2x128xbf16>
    %c0_11 = arith.constant 0 : index
    %c0_12 = arith.constant 0 : index
    %16 = vector.load %arg6[%c0_11, %c0_12] : memref<2x128xbf16, #tpu.memory_space<vmem>>, vector<2x128xbf16>
    tpu.vector_store %arg6[%c0_11, %c0_12], %15 {strides = array<i32>} : memref<2x128xbf16, #tpu.memory_space<vmem>>, vector<2x128xbf16>,
    return
  }
  func.func @transform_0(%arg0: i32) -> (i32, i32) {
    %c0_i32 = arith.constant 0 : i32
    %c0_i32_0 = arith.constant 0 : i32
    return %arg0, %c0_i32 : i32, i32
  }
  func.func @transform_1(%arg0: i32) -> (i32, i32) {
    %c0_i32 = arith.constant 0 : i32
    %c0_i32_0 = arith.constant 0 : i32
    %c0_i32_1 = arith.constant 0 : i32
    return %c0_i32, %c0_i32_0 : i32, i32
  }
  func.func @transform_2(%arg0: i32) -> (i32, i32) {
    %c0_i32 = arith.constant 0 : i32
    %c0_i32_0 = arith.constant 0 : i32
    %c0_i32_1 = arith.constant 0 : i32
    return %c0_i32, %c0_i32_0 : i32, i32
  }
  func.func @transform_3(%arg0: i32) -> (i32, i32) {
    %c0_i32 = arith.constant 0 : i32
    %c0_i32_0 = arith.constant 0 : i32
    %c0_i32_1 = arith.constant 0 : i32
    return %c0_i32, %c0_i32_0 : i32, i32
  }
  func.func @transform_4(%arg0: i32) -> (i32, i32) {
    %c0_i32 = arith.constant 0 : i32
    %c0_i32_0 = arith.constant 0 : i32
    %c0_i32_1 = arith.constant 0 : i32
    return %c0_i32, %c0_i32_0 : i32, i32
  }
  func.func @transform_5(%arg0: i32) -> (i32, i32) {
    %c0_i32 = arith.constant 0 : i32
    %c0_i32_0 = arith.constant 0 : i32
    return %arg0, %c0_i32 : i32, i32
  }
}

</mosaic_0001>

<llo_original>
// kernel: mlp_forward.1
$region0: #{mlp_forward.1}
  #allocation0 [shape = 'u32[]', space=smem, size = 0x4, offset = 0x4, fixed_abs, tag = 'smem constant byte address 0x4 - core index']
  #allocation1 [shape = 'u32[144,128]{1,0:T(1,128)}', space=vmem, size = 0x12000, scoped, tag = 'internal scratch']
  %s0 = inlined_call_operand.vmem [shape: f32[2,1024], index: 0, kind: input, shape index: {}]
  %s1 = inlined_call_operand.hbm [shape: bf16[1024,128], index: 1, kind: input, shape index: {}]
  %s2 = inlined_call_operand.vmem [shape: f32[1,128], index: 2, kind: input, shape index: {}]
  %s3 = inlined_call_operand.vmem [shape: bf16[128,128], index: 3, kind: input, shape index: {}]
  %s4 = inlined_call_operand.vmem [shape: f32[1,128], index: 4, kind: input, shape index: {}]
  %s5 = inlined_call_operand.vmem [shape: bf16[2,128], index: 5, kind: output, shape index: {}]
  %s6 = sld [smem:[#allocation0]]
  $region34: #{mlp_forward.1} parent=0
    _
  %s8 = ssub.s32 1, %s6
  %s9 = scalar_select 0, %s8, %s6
  $region1: #{mlp_forward.1} parent=0
    #allocation2 [shape = 'u8[262144]{0}', space=vmem, size = 0x40000, scoped, tag = 'input window, operand 1, single buffered']
    #allocation3 [shape = 's32[1]{0}', space=sflag, size = 0x4, scoped, tag = 'scoped memory for mlp_forward.1']
    %10 = vsyncpa [#allocation3], 0
    // Predicated region
    $region2: #{mlp_forward.1} parent=1 // pred_check
      _
    $region3: #{mlp_forward.1} parent=1 // pred_check_branch
      %12 = sbr.rel (0) target = $region5
    $region4: #{mlp_forward.1} parent=1 // pred_region
      _
    $region5: #{mlp_forward.1} parent=1 // pred_fallthru
      _
    // Predicated region
    $region6: #{mlp_forward.1} parent=1 // pred_check
      _
    $region7: #{mlp_forward.1} parent=1 // pred_check_branch
      %14 = sbr.rel (0) target = $region9
    $region8: #{mlp_forward.1} parent=1 // pred_region
      %s16 = ssub.s32 8192, 8192
      %17 = vsyncadd [#allocation3], %s16
      %s18 = sshll.u32 [#allocation2], 4
      %s19 = int_to_ptr.vmem [resolvable:$true] %s18
      %24 = dma.hbm_to_vmem [thread:$0]  %s1, 8192, %s19, [#allocation3], 64, 64, 4
    $region9: #{mlp_forward.1} parent=1 // pred_fallthru
      _
    // Predicated region
    $region10: #{mlp_forward.1} parent=1 // pred_check
      _
    $region11: #{mlp_forward.1} parent=1 // pred_check_branch
      %26 = sbr.rel (0) target = $region13
    $region12: #{mlp_forward.1} parent=1 // pred_region
      _
    $region13: #{mlp_forward.1} parent=1 // pred_fallthru
      _
    // Predicated region
    $region14: #{mlp_forward.1} parent=1 // pred_check
      _
    $region15: #{mlp_forward.1} parent=1 // pred_check_branch
      %28 = sbr.rel (0) target = $region17
    $region16: #{mlp_forward.1} parent=1 // pred_region
      _
    $region17: #{mlp_forward.1} parent=1 // pred_fallthru
      _
    // Predicated region
    $region18: #{mlp_forward.1} parent=1 // pred_check
      _
    $region19: #{mlp_forward.1} parent=1 // pred_check_branch
      %30 = sbr.rel (0) target = $region21
    $region20: #{mlp_forward.1} parent=1 // pred_region
      _
    $region21: #{mlp_forward.1} parent=1 // pred_fallthru
      _
    // Predicated region
    $region22: #{mlp_forward.1} parent=1 // pred_check
      _
    $region23: #{mlp_forward.1} parent=1 // pred_check_branch
      %32 = sbr.rel (0) target = $region25
    $region24: #{mlp_forward.1} parent=1 // pred_region
      %33 = dma.done [#allocation3], 8192
    $region25: #{mlp_forward.1} parent=1 // pred_fallthru
      _
    %v35 = vld [vmem:[%s0] sm:$0xff]
    %v36 = vld [vmem:[%s0 + $0x8] sm:$0xff]
    %v39 = vcombine.high %v35, %v35
    %v41 = vunpack.c.l.s4 1983009808
    %v42 = vunpack.c.0.s8 %v41
    %v43 = vlaneseq
    %v44 = vshrl.u32 %v43, 7
    %v45 = vsub.s32 %v42, %v44
    %v46 = vrot.slane %v35, %v45
    %v48 = vunpack.c.l.s4 1983009808
    %v49 = vunpack.c.0.s8 %v48
    %v50 = vlaneseq
    %v51 = vshrl.u32 %v50, 7
    %v52 = vsub.s32 %v49, %v51
    %v53 = vrot.slane %v39, %v52
    %v54 = vcombine.high %v46, %v46
    %v55 = vcombine.high %v53, %v53
    %v56 = vcombine.high %v36, %v36
    %v58 = vunpack.c.l.s4 1983009808
    %v59 = vunpack.c.0.s8 %v58
    %v60 = vlaneseq
    %v61 = vshrl.u32 %v60, 7
    %v62 = vsub.s32 %v59, %v61
    %v63 = vrot.slane %v36, %v62
    %v65 = vunpack.c.l.s4 1983009808
    %v66 = vunpack.c.0.s8 %v65
    %v67 = vlaneseq
    %v68 = vshrl.u32 %v67, 7
    %v69 = vsub.s32 %v66, %v68
    %v70 = vrot.slane %v56, %v69
    %v71 = vcombine.high %v63, %v63
    %v72 = vcombine.high %v70, %v70
    %v81 = vpack.c.bf16 %v46, %v46
    %v82 = vpack.c.bf16 %v54, %v54
    %v83 = vpack.c.bf16 %v53, %v53
    %v84 = vpack.c.bf16 %v55, %v55
    %v85 = vpack.c.bf16 %v63, %v63
    %v86 = vpack.c.bf16 %v71, %v71
    %v87 = vpack.c.bf16 %v70, %v70
    %v88 = vpack.c.bf16 %v72, %v72
    %v89 = vld [vmem:[#allocation2] sm:$0xf]
    %v90 = vld [vmem:[#allocation2 + $0x4] sm:$0xf]
    %v91 = vld [vmem:[#allocation2 + $0x8] sm:$0xf]
    %v92 = vld [vmem:[#allocation2 + $0xc] sm:$0xf]
    %v93 = vld [vmem:[#allocation2 + $0x10] sm:$0xf]
    %v94 = vld [vmem:[#allocation2 + $0x14] sm:$0xf]
    %v95 = vld [vmem:[#allocation2 + $0x18] sm:$0xf]
    %v96 = vld [vmem:[#allocation2 + $0x1c] sm:$0xf]
    %v97 = vld [vmem:[#allocation2 + $0x20] sm:$0xf]
    %v98 = vld [vmem:[#allocation2 + $0x24] sm:$0xf]
    %v99 = vld [vmem:[#allocation2 + $0x28] sm:$0xf]
    %v100 = vld [vmem:[#allocation2 + $0x2c] sm:$0xf]
    %v101 = vld [vmem:[#allocation2 + $0x30] sm:$0xf]
    %v102 = vld [vmem:[#allocation2 + $0x34] sm:$0xf]
    %v103 = vld [vmem:[#allocation2 + $0x38] sm:$0xf]
    %v104 = vld [vmem:[#allocation2 + $0x3c] sm:$0xf]
    %v105 = vld [vmem:[#allocation2 + $0x40] sm:$0xf]
    %v106 = vld [vmem:[#allocation2 + $0x44] sm:$0xf]
    %v107 = vld [vmem:[#allocation2 + $0x48] sm:$0xf]
    %v108 = vld [vmem:[#allocation2 + $0x4c] sm:$0xf]
    %v109 = vld [vmem:[#allocation2 + $0x50] sm:$0xf]
    %v110 = vld [vmem:[#allocation2 + $0x54] sm:$0xf]
    %v111 = vld [vmem:[#allocation2 + $0x58] sm:$0xf]
    %v112 = vld [vmem:[#allocation2 + $0x5c] sm:$0xf]
    %v113 = vld [vmem:[#allocation2 + $0x60] sm:$0xf]
    %v114 = vld [vmem:[#allocation2 + $0x64] sm:$0xf]
    %v115 = vld [vmem:[#allocation2 + $0x68] sm:$0xf]
    %v116 = vld [vmem:[#allocation2 + $0x6c] sm:$0xf]
    %v117 = vld [vmem:[#allocation2 + $0x70] sm:$0xf]
    %v118 = vld [vmem:[#allocation2 + $0x74] sm:$0xf]
    %v119 = vld [vmem:[#allocation2 + $0x78] sm:$0xf]
    %v120 = vld [vmem:[#allocation2 + $0x7c] sm:$0xf]
    %v121 = vld [vmem:[#allocation2 + $0x80] sm:$0xf]
    %v122 = vld [vmem:[#allocation2 + $0x84] sm:$0xf]
    %v123 = vld [vmem:[#allocation2 + $0x88] sm:$0xf]
    %v124 = vld [vmem:[#allocation2 + $0x8c] sm:$0xf]
    %v125 = vld [vmem:[#allocation2 + $0x90] sm:$0xf]
    %v126 = vld [vmem:[#allocation2 + $0x94] sm:$0xf]
    %v127 = vld [vmem:[#allocation2 + $0x98] sm:$0xf]
    %v128 = vld [vmem:[#allocation2 + $0x9c] sm:$0xf]
    %v129 = vld [vmem:[#allocation2 + $0xa0] sm:$0xf]
    %v130 = vld [vmem:[#allocation2 + $0xa4] sm:$0xf]
    %v131 = vld [vmem:[#allocation2 + $0xa8] sm:$0xf]
    %v132 = vld [vmem:[#allocation2 + $0xac] sm:$0xf]
    %v133 = vld [vmem:[#allocation2 + $0xb0] sm:$0xf]
    %v134 = vld [vmem:[#allocation2 + $0xb4] sm:$0xf]
    %v135 = vld [vmem:[#allocation2 + $0xb8] sm:$0xf]
    %v136 = vld [vmem:[#allocation2 + $0xbc] sm:$0xf]
    %v137 = vld [vmem:[#allocation2 + $0xc0] sm:$0xf]
    %v138 = vld [vmem:[#allocation2 + $0xc4] sm:$0xf]
    %v139 = vld [vmem:[#allocation2 + $0xc8] sm:$0xf]
    %v140 = vld [vmem:[#allocation2 + $0xcc] sm:$0xf]
    %v141 = vld [vmem:[#allocation2 + $0xd0] sm:$0xf]
    %v142 = vld [vmem:[#allocation2 + $0xd4] sm:$0xf]
    %v143 = vld [vmem:[#allocation2 + $0xd8] sm:$0xf]
    %v144 = vld [vmem:[#allocation2 + $0xdc] sm:$0xf]
    %v145 = vld [vmem:[#allocation2 + $0xe0] sm:$0xf]
    %v146 = vld [vmem:[#allocation2 + $0xe4] sm:$0xf]
    %v147 = vld [vmem:[#allocation2 + $0xe8] sm:$0xf]
    %v148 = vld [vmem:[#allocation2 + $0xec] sm:$0xf]
    %v149 = vld [vmem:[#allocation2 + $0xf0] sm:$0xf]
    %v150 = vld [vmem:[#allocation2 + $0xf4] sm:$0xf]
    %v151 = vld [vmem:[#allocation2 + $0xf8] sm:$0xf]
    %v152 = vld [vmem:[#allocation2 + $0xfc] sm:$0xf]
    %v153 = vld [vmem:[#allocation2 + $0x100] sm:$0xf]
    %v154 = vld [vmem:[#allocation2 + $0x104] sm:$0xf]
    %v155 = vld [vmem:[#allocation2 + $0x108] sm:$0xf]
    %v156 = vld [vmem:[#allocation2 + $0x10c] sm:$0xf]
    %v157 = vld [vmem:[#allocation2 + $0x110] sm:$0xf]
    %v158 = vld [vmem:[#allocation2 + $0x114] sm:$0xf]
    %v159 = vld [vmem:[#allocation2 + $0x118] sm:$0xf]
    %v160 = vld [vmem:[#allocation2 + $0x11c] sm:$0xf]
    %v161 = vld [vmem:[#allocation2 + $0x120] sm:$0xf]
    %v162 = vld [vmem:[#allocation2 + $0x124] sm:$0xf]
    %v163 = vld [vmem:[#allocation2 + $0x128] sm:$0xf]
    %v164 = vld [vmem:[#allocation2 + $0x12c] sm:$0xf]
    %v165 = vld [vmem:[#allocation2 + $0x130] sm:$0xf]
    %v166 = vld [vmem:[#allocation2 + $0x134] sm:$0xf]
    %v167 = vld [vmem:[#allocation2 + $0x138] sm:$0xf]
    %v168 = vld [vmem:[#allocation2 + $0x13c] sm:$0xf]
    %v169 = vld [vmem:[#allocation2 + $0x140] sm:$0xf]
    %v170 = vld [vmem:[#allocation2 + $0x144] sm:$0xf]
    %v171 = vld [vmem:[#allocation2 + $0x148] sm:$0xf]
    %v172 = vld [vmem:[#allocation2 + $0x14c] sm:$0xf]
    %v173 = vld [vmem:[#allocation2 + $0x150] sm:$0xf]
    %v174 = vld [vmem:[#allocation2 + $0x154] sm:$0xf]
    %v175 = vld [vmem:[#allocation2 + $0x158] sm:$0xf]
    %v176 = vld [vmem:[#allocation2 + $0x15c] sm:$0xf]
    %v177 = vld [vmem:[#allocation2 + $0x160] sm:$0xf]
    %v178 = vld [vmem:[#allocation2 + $0x164] sm:$0xf]
    %v179 = vld [vmem:[#allocation2 + $0x168] sm:$0xf]
    %v180 = vld [vmem:[#allocation2 + $0x16c] sm:$0xf]
    %v181 = vld [vmem:[#allocation2 + $0x170] sm:$0xf]
    %v182 = vld [vmem:[#allocation2 + $0x174] sm:$0xf]
    %v183 = vld [vmem:[#allocation2 + $0x178] sm:$0xf]
    %v184 = vld [vmem:[#allocation2 + $0x17c] sm:$0xf]
    %v185 = vld [vmem:[#allocation2 + $0x180] sm:$0xf]
    %v186 = vld [vmem:[#allocation2 + $0x184] sm:$0xf]
    %v187 = vld [vmem:[#allocation2 + $0x188] sm:$0xf]
    %v188 = vld [vmem:[#allocation2 + $0x18c] sm:$0xf]
    %v189 = vld [vmem:[#allocation2 + $0x190] sm:$0xf]
    %v190 = vld [vmem:[#allocation2 + $0x194] sm:$0xf]
    %v191 = vld [vmem:[#allocation2 + $0x198] sm:$0xf]
    %v192 = vld [vmem:[#allocation2 + $0x19c] sm:$0xf]
    %v193 = vld [vmem:[#allocation2 + $0x1a0] sm:$0xf]
    %v194 = vld [vmem:[#allocation2 + $0x1a4] sm:$0xf]
    %v195 = vld [vmem:[#allocation2 + $0x1a8] sm:$0xf]
    %v196 = vld [vmem:[#allocation2 + $0x1ac] sm:$0xf]
    %v197 = vld [vmem:[#allocation2 + $0x1b0] sm:$0xf]
    %v198 = vld [vmem:[#allocation2 + $0x1b4] sm:$0xf]
    %v199 = vld [vmem:[#allocation2 + $0x1b8] sm:$0xf]
    %v200 = vld [vmem:[#allocation2 + $0x1bc] sm:$0xf]
    %v201 = vld [vmem:[#allocation2 + $0x1c0] sm:$0xf]
    %v202 = vld [vmem:[#allocation2 + $0x1c4] sm:$0xf]
    %v203 = vld [vmem:[#allocation2 + $0x1c8] sm:$0xf]
    %v204 = vld [vmem:[#allocation2 + $0x1cc] sm:$0xf]
    %v205 = vld [vmem:[#allocation2 + $0x1d0] sm:$0xf]
    %v206 = vld [vmem:[#allocation2 + $0x1d4] sm:$0xf]
    %v207 = vld [vmem:[#allocation2 + $0x1d8] sm:$0xf]
    %v208 = vld [vmem:[#allocation2 + $0x1dc] sm:$0xf]
    %v209 = vld [vmem:[#allocation2 + $0x1e0] sm:$0xf]
    %v210 = vld [vmem:[#allocation2 + $0x1e4] sm:$0xf]
    %v211 = vld [vmem:[#allocation2 + $0x1e8] sm:$0xf]
    %v212 = vld [vmem:[#allocation2 + $0x1ec] sm:$0xf]
    %v213 = vld [vmem:[#allocation2 + $0x1f0] sm:$0xf]
    %v214 = vld [vmem:[#allocation2 + $0x1f4] sm:$0xf]
    %v215 = vld [vmem:[#allocation2 + $0x1f8] sm:$0xf]
    %v216 = vld [vmem:[#allocation2 + $0x1fc] sm:$0xf]
    %v217 = vld [vmem:[%s2] sm:$0x1]
    %v219 = vlaneseq
    %v220 = vshrl.u32 %v219, 7
    %v221 = vsub.s32 0, %v220
    %v222 = vrot.slane %v217, %v221
    %v352 = vunpack.c.l.b16 %v89
    %v353 = vunpack.c.l.b16 %v90
    %v354 = vunpack.c.l.b16 %v91
    %v355 = vunpack.c.l.b16 %v92
    %v356 = vunpack.c.l.b16 %v93
    %v357 = vunpack.c.l.b16 %v94
    %v358 = vunpack.c.l.b16 %v95
    %v359 = vunpack.c.l.b16 %v96
    %v360 = vunpack.c.l.b16 %v97
    %v361 = vunpack.c.l.b16 %v98
    %v362 = vunpack.c.l.b16 %v99
    %v363 = vunpack.c.l.b16 %v100
    %v364 = vunpack.c.l.b16 %v101
    %v365 = vunpack.c.l.b16 %v102
    %v366 = vunpack.c.l.b16 %v103
    %v367 = vunpack.c.l.b16 %v104
    %v368 = vunpack.c.l.b16 %v105
    %v369 = vunpack.c.l.b16 %v106
    %v370 = vunpack.c.l.b16 %v107
    %v371 = vunpack.c.l.b16 %v108
    %v372 = vunpack.c.l.b16 %v109
    %v373 = vunpack.c.l.b16 %v110
    %v374 = vunpack.c.l.b16 %v111
    %v375 = vunpack.c.l.b16 %v112
    %v376 = vunpack.c.l.b16 %v113
    %v377 = vunpack.c.l.b16 %v114
    %v378 = vunpack.c.l.b16 %v115
    %v379 = vunpack.c.l.b16 %v116
    %v380 = vunpack.c.l.b16 %v117
    %v381 = vunpack.c.l.b16 %v118
    %v382 = vunpack.c.l.b16 %v119
    %v383 = vunpack.c.l.b16 %v120
    %v384 = vunpack.c.l.b16 %v121
    %v385 = vunpack.c.l.b16 %v122
    %v386 = vunpack.c.l.b16 %v123
    %v387 = vunpack.c.l.b16 %v124
    %v388 = vunpack.c.l.b16 %v125
    %v389 = vunpack.c.l.b16 %v126
    %v390 = vunpack.c.l.b16 %v127
    %v391 = vunpack.c.l.b16 %v128
    %v392 = vunpack.c.l.b16 %v129
    %v393 = vunpack.c.l.b16 %v130
    %v394 = vunpack.c.l.b16 %v131
    %v395 = vunpack.c.l.b16 %v132
    %v396 = vunpack.c.l.b16 %v133
    %v397 = vunpack.c.l.b16 %v134
    %v398 = vunpack.c.l.b16 %v135
    %v399 = vunpack.c.l.b16 %v136
    %v400 = vunpack.c.l.b16 %v137
    %v401 = vunpack.c.l.b16 %v138
    %v402 = vunpack.c.l.b16 %v139
    %v403 = vunpack.c.l.b16 %v140
    %v404 = vunpack.c.l.b16 %v141
    %v405 = vunpack.c.l.b16 %v142
    %v406 = vunpack.c.l.b16 %v143
    %v407 = vunpack.c.l.b16 %v144
    %v408 = vunpack.c.l.b16 %v145
    %v409 = vunpack.c.l.b16 %v146
    %v410 = vunpack.c.l.b16 %v147
    %v411 = vunpack.c.l.b16 %v148
    %v412 = vunpack.c.l.b16 %v149
    %v413 = vunpack.c.l.b16 %v150
    %v414 = vunpack.c.l.b16 %v151
    %v415 = vunpack.c.l.b16 %v152
    %v416 = vunpack.c.l.b16 %v153
    %v417 = vunpack.c.l.b16 %v154
    %v418 = vunpack.c.l.b16 %v155
    %v419 = vunpack.c.l.b16 %v156
    %v420 = vunpack.c.l.b16 %v157
    %v421 = vunpack.c.l.b16 %v158
    %v422 = vunpack.c.l.b16 %v159
    %v423 = vunpack.c.l.b16 %v160
    %v424 = vunpack.c.l.b16 %v161
    %v425 = vunpack.c.l.b16 %v162
    %v426 = vunpack.c.l.b16 %v163
    %v427 = vunpack.c.l.b16 %v164
    %v428 = vunpack.c.l.b16 %v165
    %v429 = vunpack.c.l.b16 %v166
    %v430 = vunpack.c.l.b16 %v167
    %v431 = vunpack.c.l.b16 %v168
    %v432 = vunpack.c.l.b16 %v169
    %v433 = vunpack.c.l.b16 %v170
    %v434 = vunpack.c.l.b16 %v171
    %v435 = vunpack.c.l.b16 %v172
    %v436 = vunpack.c.l.b16 %v173
    %v437 = vunpack.c.l.b16 %v174
    %v438 = vunpack.c.l.b16 %v175
    %v439 = vunpack.c.l.b16 %v176
    %v440 = vunpack.c.l.b16 %v177
    %v441 = vunpack.c.l.b16 %v178
    %v442 = vunpack.c.l.b16 %v179
    %v443 = vunpack.c.l.b16 %v180
    %v444 = vunpack.c.l.b16 %v181
    %v445 = vunpack.c.l.b16 %v182
    %v446 = vunpack.c.l.b16 %v183
    %v447 = vunpack.c.l.b16 %v184
    %v448 = vunpack.c.l.b16 %v185
    %v449 = vunpack.c.l.b16 %v186
    %v450 = vunpack.c.l.b16 %v187
    %v451 = vunpack.c.l.b16 %v188
    %v452 = vunpack.c.l.b16 %v189
    %v453 = vunpack.c.l.b16 %v190
    %v454 = vunpack.c.l.b16 %v191
    %v455 = vunpack.c.l.b16 %v192
    %v456 = vunpack.c.l.b16 %v193
    %v457 = vunpack.c.l.b16 %v194
    %v458 = vunpack.c.l.b16 %v195
    %v459 = vunpack.c.l.b16 %v196
    %v460 = vunpack.c.l.b16 %v197
    %v461 = vunpack.c.l.b16 %v198
    %v462 = vunpack.c.l.b16 %v199
    %v463 = vunpack.c.l.b16 %v200
    %v464 = vunpack.c.l.b16 %v201
    %v465 = vunpack.c.l.b16 %v202
    %v466 = vunpack.c.l.b16 %v203
    %v467 = vunpack.c.l.b16 %v204
    %v468 = vunpack.c.l.b16 %v205
    %v469 = vunpack.c.l.b16 %v206
    %v470 = vunpack.c.l.b16 %v207
    %v471 = vunpack.c.l.b16 %v208
    %v472 = vunpack.c.l.b16 %v209
    %v473 = vunpack.c.l.b16 %v210
    %v474 = vunpack.c.l.b16 %v211
    %v475 = vunpack.c.l.b16 %v212
    %v476 = vunpack.c.l.b16 %v213
    %v477 = vunpack.c.l.b16 %v214
    %v478 = vunpack.c.l.b16 %v215
    %v479 = vunpack.c.l.b16 %v216
    %v480 = vpack.c.b16 %v353, %v352
    %v481 = vpack.c.b16 %v355, %v354
    %v482 = vpack.c.b16 %v357, %v356
    %v483 = vpack.c.b16 %v359, %v358
    %v484 = vpack.c.b16 %v361, %v360
    %v485 = vpack.c.b16 %v363, %v362
    %v486 = vpack.c.b16 %v365, %v364
    %v487 = vpack.c.b16 %v367, %v366
    %v488 = vpack.c.b16 %v369, %v368
    %v489 = vpack.c.b16 %v371, %v370
    %v490 = vpack.c.b16 %v373, %v372
    %v491 = vpack.c.b16 %v375, %v374
    %v492 = vpack.c.b16 %v377, %v376
    %v493 = vpack.c.b16 %v379, %v378
    %v494 = vpack.c.b16 %v381, %v380
    %v495 = vpack.c.b16 %v383, %v382
    %v496 = vpack.c.b16 %v385, %v384
    %v497 = vpack.c.b16 %v387, %v386
    %v498 = vpack.c.b16 %v389, %v388
    %v499 = vpack.c.b16 %v391, %v390
    %v500 = vpack.c.b16 %v393, %v392
    %v501 = vpack.c.b16 %v395, %v394
    %v502 = vpack.c.b16 %v397, %v396
    %v503 = vpack.c.b16 %v399, %v398
    %v504 = vpack.c.b16 %v401, %v400
    %v505 = vpack.c.b16 %v403, %v402
    %v506 = vpack.c.b16 %v405, %v404
    %v507 = vpack.c.b16 %v407, %v406
    %v508 = vpack.c.b16 %v409, %v408
    %v509 = vpack.c.b16 %v411, %v410
    %v510 = vpack.c.b16 %v413, %v412
    %v511 = vpack.c.b16 %v415, %v414
    %v512 = vpack.c.b16 %v417, %v416
    %v513 = vpack.c.b16 %v419, %v418
    %v514 = vpack.c.b16 %v421, %v420
    %v515 = vpack.c.b16 %v423, %v422
    %v516 = vpack.c.b16 %v425, %v424
    %v517 = vpack.c.b16 %v427, %v426
    %v518 = vpack.c.b16 %v429, %v428
    %v519 = vpack.c.b16 %v431, %v430
    %v520 = vpack.c.b16 %v433, %v432
    %v521 = vpack.c.b16 %v435, %v434
    %v522 = vpack.c.b16 %v437, %v436
    %v523 = vpack.c.b16 %v439, %v438
    %v524 = vpack.c.b16 %v441, %v440
    %v525 = vpack.c.b16 %v443, %v442
    %v526 = vpack.c.b16 %v445, %v444
    %v527 = vpack.c.b16 %v447, %v446
    %v528 = vpack.c.b16 %v449, %v448
    %v529 = vpack.c.b16 %v451, %v450
    %v530 = vpack.c.b16 %v453, %v452
    %v531 = vpack.c.b16 %v455, %v454
    %v532 = vpack.c.b16 %v457, %v456
    %v533 = vpack.c.b16 %v459, %v458
    %v534 = vpack.c.b16 %v461, %v460
    %v535 = vpack.c.b16 %v463, %v462
    %v536 = vpack.c.b16 %v465, %v464
    %v537 = vpack.c.b16 %v467, %v466
    %v538 = vpack.c.b16 %v469, %v468
    %v539 = vpack.c.b16 %v471, %v470
    %v540 = vpack.c.b16 %v473, %v472
    %v541 = vpack.c.b16 %v475, %v474
    %v542 = vpack.c.b16 %v477, %v476
    %v543 = vpack.c.b16 %v479, %v478
    %608 = vmatprep.subr.bf16.mxu0 0
    %609 = vmatpush1.bf16.msra.mxu0 %v480
    %610 = vmatprep.subr.bf16.mxu0 0
    %611 = vmatpush1.bf16.msra.mxu0 %v481
    %612 = vmatprep.subr.bf16.mxu0 0
    %613 = vmatpush1.bf16.msra.mxu0 %v482
    %614 = vmatprep.subr.bf16.mxu0 0
    %615 = vmatpush1.bf16.msra.mxu0 %v483
    %616 = vmatprep.subr.bf16.mxu0 0
    %617 = vmatpush1.bf16.msra.mxu0 %v484
    %618 = vmatprep.subr.bf16.mxu0 0
    %619 = vmatpush1.bf16.msra.mxu0 %v485
    %620 = vmatprep.subr.bf16.mxu0 0
    %621 = vmatpush1.bf16.msra.mxu0 %v486
    %622 = vmatprep.subr.bf16.mxu0 0
    %623 = vmatpush1.bf16.msra.mxu0 %v487
    %624 = vmatprep.subr.bf16.mxu0 0
    %625 = vmatpush1.bf16.msra.mxu0 %v488
    %626 = vmatprep.subr.bf16.mxu0 0
    %627 = vmatpush1.bf16.msra.mxu0 %v489
    %628 = vmatprep.subr.bf16.mxu0 0
    %629 = vmatpush1.bf16.msra.mxu0 %v490
    %630 = vmatprep.subr.bf16.mxu0 0
    %631 = vmatpush1.bf16.msra.mxu0 %v491
    %632 = vmatprep.subr.bf16.mxu0 0
    %633 = vmatpush1.bf16.msra.mxu0 %v492
    %634 = vmatprep.subr.bf16.mxu0 0
    %635 = vmatpush1.bf16.msra.mxu0 %v493
    %636 = vmatprep.subr.bf16.mxu0 0
    %637 = vmatpush1.bf16.msra.mxu0 %v494
    %638 = vmatprep.subr.bf16.mxu0 0
    %639 = vmatpush1.bf16.msra.mxu0 %v495
    %640 = vmatprep.mubr.bf16.mxu0 %v82
    %641 = vmatmul.mubr.bf16.gmra.mrb[0].mxu0 %v81
    %v642 = vpop.f32.mrb[0].mxu0
    %v643 = vadd.f32 %v222, %v642
    %v644 = vpop.f32.mrb[0].mxu0
    %v645 = vpop.f32.mrb[0].mxu0
    %v646 = vpop.f32.mrb[0].mxu0
    %647 = vdwg.mxu0
    %648 = vmatprep.subr.bf16.mxu0 0
    %649 = vmatpush1.bf16.msra.mxu0 %v496
    %650 = vmatprep.subr.bf16.mxu0 0
    %651 = vmatpush1.bf16.msra.mxu0 %v497
    %652 = vmatprep.subr.bf16.mxu0 0
    %653 = vmatpush1.bf16.msra.mxu0 %v498
    %654 = vmatprep.subr.bf16.mxu0 0
    %655 = vmatpush1.bf16.msra.mxu0 %v499
    %656 = vmatprep.subr.bf16.mxu0 0
    %657 = vmatpush1.bf16.msra.mxu0 %v500
    %658 = vmatprep.subr.bf16.mxu0 0
    %659 = vmatpush1.bf16.msra.mxu0 %v501
    %660 = vmatprep.subr.bf16.mxu0 0
    %661 = vmatpush1.bf16.msra.mxu0 %v502
    %662 = vmatprep.subr.bf16.mxu0 0
    %663 = vmatpush1.bf16.msra.mxu0 %v503
    %664 = vmatprep.subr.bf16.mxu0 0
    %665 = vmatpush1.bf16.msra.mxu0 %v504
    %666 = vmatprep.subr.bf16.mxu0 0
    %667 = vmatpush1.bf16.msra.mxu0 %v505
    %668 = vmatprep.subr.bf16.mxu0 0
    %669 = vmatpush1.bf16.msra.mxu0 %v506
    %670 = vmatprep.subr.bf16.mxu0 0
    %671 = vmatpush1.bf16.msra.mxu0 %v507
    %672 = vmatprep.subr.bf16.mxu0 0
    %673 = vmatpush1.bf16.msra.mxu0 %v508
    %674 = vmatprep.subr.bf16.mxu0 0
    %675 = vmatpush1.bf16.msra.mxu0 %v509
    %676 = vmatprep.subr.bf16.mxu0 0
    %677 = vmatpush1.bf16.msra.mxu0 %v510
    %678 = vmatprep.subr.bf16.mxu0 0
    %679 = vmatpush1.bf16.msra.mxu0 %v511
    %680 = vmatprep.mubr.bf16.mxu0 %v84
    %681 = vmatmul.mubr.bf16.gmra.mrb[0].mxu0 %v83
    %v682 = vpop.f32.mrb[0].mxu0
    %v683 = vadd.f32 %v643, %v682
    %v684 = vpop.f32.mrb[0].mxu0
    %v685 = vpop.f32.mrb[0].mxu0
    %v686 = vpop.f32.mrb[0].mxu0
    %687 = vdwg.mxu0
    %688 = vmatprep.subr.bf16.mxu0 0
    %689 = vmatpush1.bf16.msra.mxu0 %v512
    %690 = vmatprep.subr.bf16.mxu0 0
    %691 = vmatpush1.bf16.msra.mxu0 %v513
    %692 = vmatprep.subr.bf16.mxu0 0
    %693 = vmatpush1.bf16.msra.mxu0 %v514
    %694 = vmatprep.subr.bf16.mxu0 0
    %695 = vmatpush1.bf16.msra.mxu0 %v515
    %696 = vmatprep.subr.bf16.mxu0 0
    %697 = vmatpush1.bf16.msra.mxu0 %v516
    %698 = vmatprep.subr.bf16.mxu0 0
    %699 = vmatpush1.bf16.msra.mxu0 %v517
    %700 = vmatprep.subr.bf16.mxu0 0
    %701 = vmatpush1.bf16.msra.mxu0 %v518
    %702 = vmatprep.subr.bf16.mxu0 0
    %703 = vmatpush1.bf16.msra.mxu0 %v519
    %704 = vmatprep.subr.bf16.mxu0 0
    %705 = vmatpush1.bf16.msra.mxu0 %v520
    %706 = vmatprep.subr.bf16.mxu0 0
    %707 = vmatpush1.bf16.msra.mxu0 %v521
    %708 = vmatprep.subr.bf16.mxu0 0
    %709 = vmatpush1.bf16.msra.mxu0 %v522
    %710 = vmatprep.subr.bf16.mxu0 0
    %711 = vmatpush1.bf16.msra.mxu0 %v523
    %712 = vmatprep.subr.bf16.mxu0 0
    %713 = vmatpush1.bf16.msra.mxu0 %v524
    %714 = vmatprep.subr.bf16.mxu0 0
    %715 = vmatpush1.bf16.msra.mxu0 %v525
    %716 = vmatprep.subr.bf16.mxu0 0
    %717 = vmatpush1.bf16.msra.mxu0 %v526
    %718 = vmatprep.subr.bf16.mxu0 0
    %719 = vmatpush1.bf16.msra.mxu0 %v527
    %720 = vmatprep.mubr.bf16.mxu0 %v86
    %721 = vmatmul.mubr.bf16.gmra.mrb[0].mxu0 %v85
    %v722 = vpop.f32.mrb[0].mxu0
    %v723 = vadd.f32 %v683, %v722
    %v724 = vpop.f32.mrb[0].mxu0
    %v725 = vpop.f32.mrb[0].mxu0
    %v726 = vpop.f32.mrb[0].mxu0
    %727 = vdwg.mxu0
    %728 = vmatprep.subr.bf16.mxu0 0
    %729 = vmatpush1.bf16.msra.mxu0 %v528
    %730 = vmatprep.subr.bf16.mxu0 0
    %731 = vmatpush1.bf16.msra.mxu0 %v529
    %732 = vmatprep.subr.bf16.mxu0 0
    %733 = vmatpush1.bf16.msra.mxu0 %v530
    %734 = vmatprep.subr.bf16.mxu0 0
    %735 = vmatpush1.bf16.msra.mxu0 %v531
    %736 = vmatprep.subr.bf16.mxu0 0
    %737 = vmatpush1.bf16.msra.mxu0 %v532
    %738 = vmatprep.subr.bf16.mxu0 0
    %739 = vmatpush1.bf16.msra.mxu0 %v533
    %740 = vmatprep.subr.bf16.mxu0 0
    %741 = vmatpush1.bf16.msra.mxu0 %v534
    %742 = vmatprep.subr.bf16.mxu0 0
    %743 = vmatpush1.bf16.msra.mxu0 %v535
    %744 = vmatprep.subr.bf16.mxu0 0
    %745 = vmatpush1.bf16.msra.mxu0 %v536
    %746 = vmatprep.subr.bf16.mxu0 0
    %747 = vmatpush1.bf16.msra.mxu0 %v537
    %748 = vmatprep.subr.bf16.mxu0 0
    %749 = vmatpush1.bf16.msra.mxu0 %v538
    %750 = vmatprep.subr.bf16.mxu0 0
    %751 = vmatpush1.bf16.msra.mxu0 %v539
    %752 = vmatprep.subr.bf16.mxu0 0
    %753 = vmatpush1.bf16.msra.mxu0 %v540
    %754 = vmatprep.subr.bf16.mxu0 0
    %755 = vmatpush1.bf16.msra.mxu0 %v541
    %756 = vmatprep.subr.bf16.mxu0 0
    %757 = vmatpush1.bf16.msra.mxu0 %v542
    %758 = vmatprep.subr.bf16.mxu0 0
    %759 = vmatpush1.bf16.msra.mxu0 %v543
    %760 = vmatprep.mubr.bf16.mxu0 %v88
    %761 = vmatmul.mubr.bf16.gmra.mrb[0].mxu0 %v87
    %v762 = vpop.f32.mrb[0].mxu0
    %v763 = vadd.f32 %v723, %v762
    %v764 = vpop.f32.mrb[0].mxu0
    %v765 = vpop.f32.mrb[0].mxu0
    %v766 = vpop.f32.mrb[0].mxu0
    %767 = vdwg.mxu0
    %v768 = vmax.f32 %v763, 0.0
    %v769 = vpack.c.bf16 %v768, %v768
    %v770 = vld [vmem:[%s3] sm:$0xf]
    %v771 = vld [vmem:[%s3 + $0x4] sm:$0xf]
    %v772 = vld [vmem:[%s3 + $0x8] sm:$0xf]
    %v773 = vld [vmem:[%s3 + $0xc] sm:$0xf]
    %v774 = vld [vmem:[%s3 + $0x10] sm:$0xf]
    %v775 = vld [vmem:[%s3 + $0x14] sm:$0xf]
    %v776 = vld [vmem:[%s3 + $0x18] sm:$0xf]
    %v777 = vld [vmem:[%s3 + $0x1c] sm:$0xf]
    %v778 = vld [vmem:[%s3 + $0x20] sm:$0xf]
    %v779 = vld [vmem:[%s3 + $0x24] sm:$0xf]
    %v780 = vld [vmem:[%s3 + $0x28] sm:$0xf]
    %v781 = vld [vmem:[%s3 + $0x2c] sm:$0xf]
    %v782 = vld [vmem:[%s3 + $0x30] sm:$0xf]
    %v783 = vld [vmem:[%s3 + $0x34] sm:$0xf]
    %v784 = vld [vmem:[%s3 + $0x38] sm:$0xf]
    %v785 = vld [vmem:[%s3 + $0x3c] sm:$0xf]
    %v786 = vld [vmem:[%s4] sm:$0x1]
    %v788 = vlaneseq
    %v789 = vshrl.u32 %v788, 7
    %v790 = vsub.s32 0, %v789
    %v791 = vrot.slane %v786, %v790
    %v809 = vunpack.c.l.b16 %v770
    %v810 = vunpack.c.l.b16 %v771
    %v811 = vunpack.c.l.b16 %v772
    %v812 = vunpack.c.l.b16 %v773
    %v813 = vunpack.c.l.b16 %v774
    %v814 = vunpack.c.l.b16 %v775
    %v815 = vunpack.c.l.b16 %v776
    %v816 = vunpack.c.l.b16 %v777
    %v817 = vunpack.c.l.b16 %v778
    %v818 = vunpack.c.l.b16 %v779
    %v819 = vunpack.c.l.b16 %v780
    %v820 = vunpack.c.l.b16 %v781
    %v821 = vunpack.c.l.b16 %v782
    %v822 = vunpack.c.l.b16 %v783
    %v823 = vunpack.c.l.b16 %v784
    %v824 = vunpack.c.l.b16 %v785
    %v825 = vpack.c.b16 %v810, %v809
    %v826 = vpack.c.b16 %v812, %v811
    %v827 = vpack.c.b16 %v814, %v813
    %v828 = vpack.c.b16 %v816, %v815
    %v829 = vpack.c.b16 %v818, %v817
    %v830 = vpack.c.b16 %v820, %v819
    %v831 = vpack.c.b16 %v822, %v821
    %v832 = vpack.c.b16 %v824, %v823
    %841 = vmatprep.subr.bf16.mxu0 0
    %842 = vmatpush1.bf16.msra.mxu0 %v825
    %843 = vmatprep.subr.bf16.mxu0 0
    %844 = vmatpush1.bf16.msra.mxu0 %v826
    %845 = vmatprep.subr.bf16.mxu0 0
    %846 = vmatpush1.bf16.msra.mxu0 %v827
    %847 = vmatprep.subr.bf16.mxu0 0
    %848 = vmatpush1.bf16.msra.mxu0 %v828
    %849 = vmatprep.subr.bf16.mxu0 0
    %850 = vmatpush1.bf16.msra.mxu0 %v829
    %851 = vmatprep.subr.bf16.mxu0 0
    %852 = vmatpush1.bf16.msra.mxu0 %v830
    %853 = vmatprep.subr.bf16.mxu0 0
    %854 = vmatpush1.bf16.msra.mxu0 %v831
    %855 = vmatprep.subr.bf16.mxu0 0
    %856 = vmatpush1.bf16.msra.mxu0 %v832
    %857 = vmatprep.subr.bf16.mxu0 0
    %858 = vmatpush1.bf16.msra.mxu0 0
    %859 = vmatprep.subr.bf16.mxu0 0
    %860 = vmatpush1.bf16.msra.mxu0 0
    %861 = vmatprep.subr.bf16.mxu0 0
    %862 = vmatpush1.bf16.msra.mxu0 0
    %863 = vmatprep.subr.bf16.mxu0 0
    %864 = vmatpush1.bf16.msra.mxu0 0
    %865 = vmatprep.subr.bf16.mxu0 0
    %866 = vmatpush1.bf16.msra.mxu0 0
    %867 = vmatprep.subr.bf16.mxu0 0
    %868 = vmatpush1.bf16.msra.mxu0 0
    %869 = vmatprep.subr.bf16.mxu0 0
    %870 = vmatpush1.bf16.msra.mxu0 0
    %871 = vmatprep.subr.bf16.mxu0 0
    %872 = vmatpush1.bf16.msra.mxu0 0
    %873 = vmatprep.mubr.bf16.mxu0 0
    %874 = vmatmul.mubr.bf16.gmra.mrb[0].mxu0 %v769
    %v875 = vpop.f32.mrb[0].mxu0
    %v876 = vadd.f32 %v791, %v875
    %v877 = vpop.f32.mrb[0].mxu0
    %v878 = vpop.f32.mrb[0].mxu0
    %v879 = vpop.f32.mrb[0].mxu0
    %880 = vdwg.mxu0
    %v881 = vpack.c.bf16 %v876, %v876
    %882 = vst [vmem:[%s5] sm:$0x1] %v881
    // Predicated region
    $region26: #{mlp_forward.1} parent=1 // pred_check
      _
    $region27: #{mlp_forward.1} parent=1 // pred_check_branch
      %884 = sbr.rel (0) target = $region29
    $region28: #{mlp_forward.1} parent=1 // pred_region
      _
    $region29: #{mlp_forward.1} parent=1 // pred_fallthru
      _
    // Predicated region
    $region30: #{mlp_forward.1} parent=1 // pred_check
      _
    $region31: #{mlp_forward.1} parent=1 // pred_check_branch
      %886 = sbr.rel (0) target = $region33
    $region32: #{mlp_forward.1} parent=1 // pred_region
      _
    $region33: #{mlp_forward.1} parent=1 // pred_fallthru
      _
    %887 = vsyncpa [#allocation3], 1

</llo_original>
